<compile_context>
chip_gen: v6e
topology: v6e:2x2x1
jax: 0.10.0
libtpu: 0.0.40
codegen_flags: <defaults>
</compile_context>

<pallas_src>
import functools

import jax
import jax.numpy as jnp
from jax.experimental import pallas as pl
from jax.experimental.pallas import tpu as pltpu


def _reasoner_kernel(*refs, n_layers):
    if n_layers > 1:
        (snap_ref, choices_ref, w0s_ref, w0c_ref, whr_ref, bh_ref, wout_ref,
         out_ref) = refs
    else:
        snap_ref, choices_ref, w0s_ref, w0c_ref, bh_ref, wout_ref, out_ref = refs
        whr_ref = None

    TB, C, d = choices_ref.shape
    two_d = 2 * d

    # ---- Layer 0 with split weight: cat([snap, ch]) @ W0 == snap@W_s + ch@W_c
    b0 = bh_ref[0]                                          # (1, 2d)   f32
    pre = jnp.dot(snap_ref[...], w0s_ref[...],
                  preferred_element_type=jnp.float32) + b0  # (TB, 2d)  f32

    ch = choices_ref[...].reshape(TB * C, d)                # leading-dim merge (layout-free)
    hc = jnp.dot(ch, w0c_ref[...],
                 preferred_element_type=jnp.float32)        # (TB*C, 2d) f32
    h = jnp.maximum(hc.reshape(TB, C, two_d) + pre[:, None, :], 0.0)
    h = h.reshape(TB * C, two_d)                            # flat 2-D activations (f32)

    # ---- Remaining hidden layers: Linear(2d->2d) + ReLU (statically unrolled)
    for i in range(n_layers - 1):
        w = whr_ref[i]                                      # (2d, 2d)  bf16
        b = bh_ref[i + 1]                                   # (1, 2d)   f32
        h = jnp.dot(h.astype(w.dtype), w, preferred_element_type=jnp.float32)
        h = jnp.maximum(h + b, 0.0)

    # ---- Final Linear(2d -> 1, no bias): multiply + XLU lane-reduce, chunked
    # over 128-lane tiles of the feature axis so the f32 product temp never
    # exceeds one lane tile per activation row (bounds peak live bytes).
    h3 = h.reshape(TB, C, two_d)
    w_row = wout_ref[...]                                   # (1, 2d)   f32
    logits = jnp.zeros((TB, C), jnp.float32)
    for s in range(0, two_d, 128):
        e = min(s + 128, two_d)
        logits = logits + jnp.sum(h3[:, :, s:e] * w_row[None, :, s:e], axis=-1)

    # ---- Numerically stable log-softmax over the choices axis
    m = jnp.max(logits, axis=-1, keepdims=True)
    sft = logits - m
    lse = jnp.log(jnp.sum(jnp.exp(sft), axis=-1, keepdims=True))
    out_ref[...] = (sft - lse).astype(out_ref.dtype)


def _round_up(x, m):
    return ((x + m - 1) // m) * m


def _vmem_capacity_bytes():
    try:
        return int(pltpu.get_tpu_info().vmem_capacity_bytes)
    except Exception:
        return 64 * 1024 * 1024   # conservative default: v7x per-TC VMEM


def reasoner_forward(snapshot, choices, W_h, b_h, w_out, *, block_b=512):
    """snapshot: (B,d); choices: (B,C,d); W_h: (L,2d,2d); b_h: (L,1,2d);
    w_out: (1,2d).  Returns (B,C) f32 log-probabilities."""
    B, C, d = choices.shape
    n_layers = int(W_h.shape[0])
    two_d = 2 * d
    lr = max(n_layers - 1, 0)

    # Host-side first-layer weight split; bf16 streamed operands, f32 math.
    w0_s = W_h[0, :d, :].astype(jnp.bfloat16)               # snapshot half (d, 2d)
    w0_c = W_h[0, d:, :].astype(jnp.bfloat16)               # choices half  (d, 2d)
    wh_rest = W_h[1:].astype(jnp.bfloat16) if n_layers > 1 else None
    b_h = b_h.astype(jnp.float32)
    w_out = w_out.astype(jnp.float32)
    snapshot = snapshot.astype(jnp.bfloat16)
    choices = choices.astype(jnp.bfloat16)

    # ---- Generation-aware VMEM budget (v7x: 64 MiB/TC, v5e/v6e: 128 MiB).
    vmem_cap = _vmem_capacity_bytes()
    vmem_limit = (48 * 1024 * 1024 if vmem_cap <= 64 * 1024 * 1024
                  else 96 * 1024 * 1024)

    resident_w_bytes = 2 * (2 * d * two_d * 2               # split W0 halves (bf16)
                            + lr * two_d * two_d * 2        # W_h[1:]        (bf16)
                            + n_layers * two_d * 4          # biases         (f32)
                            + two_d * 4)                    # w_out          (f32)

    def _tile_bytes(tb):
        act = tb * C * two_d * 4                            # f32 activation slab
        return (2 * act                                     # h in + matmul out live
                + 2 * tb * C * d * 2                        # choices tile (bf16, x2 bufs)
                + 2 * tb * d * 2                            # snapshot tile
                + 2 * tb * C * 4                            # output tile
                + resident_w_bytes)

    budget = int(vmem_limit * 0.75)                         # headroom for compiler scratch
    if B >= 16:
        # Keep >=2 grid steps so the "parallel" batch axis can shard across
        # both v7x TensorCores; tiles are sublane (8) aligned.
        upper = min(B, block_b, _round_up(pl.cdiv(B, 2), 8))
        cands = list(range((upper // 8) * 8, 7, -8)) or [8]
    else:
        cands = [B]                                         # tiny batch: single full tile
    tb = cands[-1]
    for t in cands:
        if _tile_bytes(t) <= budget:
            tb = t
            break
    grid = (pl.cdiv(B, tb),)

    flops = (2 * B * d * two_d                       # snapshot half of layer 0
             + 2 * B * C * d * two_d                 # choices half of layer 0
             + 2 * B * C * two_d * two_d * lr        # remaining hidden layers
             + 2 * B * C * two_d)                    # final projection
    bytes_accessed = (2 * B * d + 2 * B * C * d + 4 * B * C
                      + 2 * n_layers * two_d * two_d
                      + 4 * n_layers * two_d + 4 * two_d)
    cost = pl.CostEstimate(flops=flops, transcendentals=B * C + B,
                           bytes_accessed=bytes_accessed)

    in_specs = [
        pl.BlockSpec((tb, d), lambda i: (i, 0)),                  # snapshot tile
        pl.BlockSpec((tb, C, d), lambda i: (i, 0, 0)),            # choices tile
        pl.BlockSpec((d, two_d), lambda i: (0, 0)),               # W0 snapshot half (resident)
        pl.BlockSpec((d, two_d), lambda i: (0, 0)),               # W0 choices half (resident)
    ]
    args = [snapshot, choices, w0_s, w0_c]
    if n_layers > 1:
        in_specs.append(pl.BlockSpec((lr, two_d, two_d), lambda i: (0, 0, 0)))
        args.append(wh_rest)
    in_specs += [
        pl.BlockSpec((n_layers, 1, two_d), lambda i: (0, 0, 0)),  # b_h   (resident)
        pl.BlockSpec((1, two_d), lambda i: (0, 0)),               # w_out (resident)
    ]
    args += [b_h, w_out]

    kernel = functools.partial(_reasoner_kernel, n_layers=n_layers)

    return pl.pallas_call(
        kernel,
        out_shape=jax.ShapeDtypeStruct((B, C), jnp.float32),
        grid=grid,
        in_specs=in_specs,
        out_specs=pl.BlockSpec((tb, C), lambda i: (i, 0)),
        compiler_params=pltpu.CompilerParams(
            dimension_semantics=("parallel",),
            vmem_limit_bytes=vmem_limit),
        cost_estimate=cost,
    )(*args)


def reasoner_reference(snapshot, choices, W_h, b_h, w_out):
    """Pure-JAX f32 reference mirroring the PyTorch forward."""
    B, C, d = choices.shape
    x = jnp.concatenate(
        [jnp.broadcast_to(snapshot[:, None, :], (B, C, d)), choices], axis=-1)
    h = x
    for i in range(W_h.shape[0]):
        h = jnp.maximum(jnp.einsum("bcd,de->bce", h, W_h[i]) + b_h[i][None], 0.0)
    logits = jnp.sum(h * w_out[None, :, :], axis=-1)
    return jax.nn.log_softmax(logits, axis=-1)


if __name__ == "__main__":
    B, C, d, n_layers = 2, 8, 16, 2

    key = jax.random.PRNGKey(0)
    k_snap, k_ch, k_wh, k_bh, k_wo = jax.random.split(key, 5)

    snapshot = jax.random.normal(k_snap, (B, d), jnp.float32)
    choices = jax.random.normal(k_ch, (B, C, d), jnp.float32)

    # Deterministic synthetic parameters (shapes from FeedForwardNet config).
    W_h = 0.1 * jax.random.normal(k_wh, (n_layers, 2 * d, 2 * d), jnp.float32)
    b_h = 0.1 * jax.random.normal(k_bh, (n_layers, 1, 2 * d), jnp.float32)
    w_out = 0.1 * jax.random.normal(k_wo, (1, 2 * d), jnp.float32)

    out = jax.block_until_ready(
        reasoner_forward(snapshot, choices, W_h, b_h, w_out))
    ref = reasoner_reference(snapshot, choices, W_h, b_h, w_out)
    assert out.shape == (B, C)
    # bf16 streamed operands + bf16 weights (f32 accumulate) vs f32 reference.
    assert jnp.allclose(out, ref, atol=5e-2, rtol=5e-2), (out, ref)

    # Exercise the single-hidden-layer path (no wh_rest operand is passed).
    out1 = jax.block_until_ready(
        reasoner_forward(snapshot, choices, W_h[:1], b_h[:1], w_out))
    ref1 = reasoner_reference(snapshot, choices, W_h[:1], b_h[:1], w_out)
    assert jnp.allclose(out1, ref1, atol=5e-2, rtol=5e-2), (out1, ref1)

    print("KERNEL_OK")
</pallas_src>

<mosaic_0001>
module attributes {stable_mosaic.version = 11 : i64} {
  func.func @_reasoner_kernel(%arg0: i32, %arg1: memref<2x16xbf16, #tpu.memory_space<vmem>>, %arg2: memref<2x8x16xbf16, #tpu.memory_space<vmem>>, %arg3: memref<16x32xbf16, #tpu.memory_space<vmem>>, %arg4: memref<16x32xbf16, #tpu.memory_space<vmem>>, %arg5: memref<1x32x32xbf16, #tpu.memory_space<vmem>>, %arg6: memref<2x1x32xf32, #tpu.memory_space<vmem>>, %arg7: memref<1x32xf32, #tpu.memory_space<vmem>>, %arg8: memref<2x8xf32, #tpu.memory_space<vmem>>) attributes {dimension_semantics = [#tpu.dimension_semantics<parallel>], iteration_bounds = array<i64: 1>, scalar_prefetch = 0 : i64, scratch_operands = 0 : i64, tpu.core_type = #tpu.core_type<tc>, window_params = [{transform_indices = @transform_0, window_bounds = array<i64: 2, 16>}, {transform_indices = @transform_1, window_bounds = array<i64: 2, 8, 16>}, {pipeline_mode = #tpu.pipeline_mode<synchronous>, transform_indices = @transform_2, window_bounds = array<i64: 16, 32>}, {pipeline_mode = #tpu.pipeline_mode<synchronous>, transform_indices = @transform_3, window_bounds = array<i64: 16, 32>}, {pipeline_mode = #tpu.pipeline_mode<synchronous>, transform_indices = @transform_4, window_bounds = array<i64: 1, 32, 32>}, {pipeline_mode = #tpu.pipeline_mode<synchronous>, transform_indices = @transform_5, window_bounds = array<i64: 2, 1, 32>}, {pipeline_mode = #tpu.pipeline_mode<synchronous>, transform_indices = @transform_6, window_bounds = array<i64: 1, 32>}, {transform_indices = @transform_7, window_bounds = array<i64: 2, 8>}]} {
    %c0 = arith.constant 0 : index
    %c0_0 = arith.constant 0 : index
    %c0_1 = arith.constant 0 : index
    %0 = vector.load %arg6[%c0, %c0_0, %c0_1] : memref<2x1x32xf32, #tpu.memory_space<vmem>>, vector<1x1x32xf32>
    %1 = vector.shape_cast %0 : vector<1x1x32xf32> to vector<1x32xf32>
    %c0_2 = arith.constant 0 : index
    %c0_3 = arith.constant 0 : index
    %2 = vector.load %arg1[%c0_2, %c0_3] : memref<2x16xbf16, #tpu.memory_space<vmem>>, vector<2x16xbf16>
    %c0_4 = arith.constant 0 : index
    %c0_5 = arith.constant 0 : index
    %3 = vector.load %arg3[%c0_4, %c0_5] : memref<16x32xbf16, #tpu.memory_space<vmem>>, vector<16x32xbf16>
    %cst = arith.constant dense<0.000000e+00> : vector<2x32xf32>
    %4 = tpu.matmul %2, %3, %cst {dimension_numbers = #tpu.dot_dimension_numbers<[1], [0], [0], [1], [0, 0, 1, 1], [], []>} : vector<2x16xbf16>, vector<16x32xbf16>, vector<2x32xf32> -> vector<2x32xf32>
    %5 = vector.broadcast %1 : vector<1x32xf32> to vector<2x32xf32>
    %6 = arith.addf %4, %5 : vector<2x32xf32>
    %c0_6 = arith.constant 0 : index
    %c0_7 = arith.constant 0 : index
    %c0_8 = arith.constant 0 : index
    %7 = vector.load %arg2[%c0_6, %c0_7, %c0_8] : memref<2x8x16xbf16, #tpu.memory_space<vmem>>, vector<2x8x16xbf16>
    %8 = vector.shape_cast %7 : vector<2x8x16xbf16> to vector<16x16xbf16>
    %c0_9 = arith.constant 0 : index
    %c0_10 = arith.constant 0 : index
    %9 = vector.load %arg4[%c0_9, %c0_10] : memref<16x32xbf16, #tpu.memory_space<vmem>>, vector<16x32xbf16>
    %cst_11 = arith.constant dense<0.000000e+00> : vector<16x32xf32>
    %10 = tpu.matmul %8, %9, %cst_11 {dimension_numbers = #tpu.dot_dimension_numbers<[1], [0], [0], [1], [0, 0, 1, 1], [], []>} : vector<16x16xbf16>, vector<16x32xbf16>, vector<16x32xf32> -> vector<16x32xf32>
    %11 = vector.shape_cast %10 : vector<16x32xf32> to vector<2x8x32xf32>
    %12 = vector.shape_cast %6 : vector<2x32xf32> to vector<2x1x32xf32>
    %13 = vector.broadcast %12 : vector<2x1x32xf32> to vector<2x8x32xf32>
    %14 = arith.addf %11, %13 : vector<2x8x32xf32>
    %cst_12 = arith.constant 0.000000e+00 : f32
    %15 = vector.broadcast %cst_12 : f32 to vector<2x8x32xf32>
    %16 = arith.maximumf %14, %15 : vector<2x8x32xf32>
    %17 = vector.shape_cast %16 : vector<2x8x32xf32> to vector<16x32xf32>
    %c0_13 = arith.constant 0 : index
    %c0_14 = arith.constant 0 : index
    %c0_15 = arith.constant 0 : index
    %18 = vector.load %arg5[%c0_13, %c0_14, %c0_15] : memref<1x32x32xbf16, #tpu.memory_space<vmem>>, vector<1x32x32xbf16>
    %19 = vector.shape_cast %18 : vector<1x32x32xbf16> to vector<32x32xbf16>
    %c1 = arith.constant 1 : index
    %c0_16 = arith.constant 0 : index
    %c0_17 = arith.constant 0 : index
    %20 = vector.load %arg6[%c1, %c0_16, %c0_17] : memref<2x1x32xf32, #tpu.memory_space<vmem>>, vector<1x1x32xf32>
    %21 = vector.shape_cast %20 : vector<1x1x32xf32> to vector<1x32xf32>
    %22 = arith.truncf %17 : vector<16x32xf32> to vector<16x32xbf16>
    %cst_18 = arith.constant dense<0.000000e+00> : vector<16x32xf32>
    %23 = tpu.matmul %22, %19, %cst_18 {dimension_numbers = #tpu.dot_dimension_numbers<[1], [0], [0], [1], [0, 0, 1, 1], [], []>} : vector<16x32xbf16>, vector<32x32xbf16>, vector<16x32xf32> -> vector<16x32xf32>
    %24 = vector.broadcast %21 : vector<1x32xf32> to vector<16x32xf32>
    %25 = arith.addf %23, %24 : vector<16x32xf32>
    %cst_19 = arith.constant 0.000000e+00 : f32
    %26 = vector.broadcast %cst_19 : f32 to vector<16x32xf32>
    %27 = arith.maximumf %25, %26 : vector<16x32xf32>
    %28 = vector.shape_cast %27 : vector<16x32xf32> to vector<2x8x32xf32>
    %c0_20 = arith.constant 0 : index
    %c0_21 = arith.constant 0 : index
    %29 = vector.load %arg7[%c0_20, %c0_21] : memref<1x32xf32, #tpu.memory_space<vmem>>, vector<1x32xf32>
    %cst_22 = arith.constant 0.000000e+00 : f32
    %30 = vector.broadcast %cst_22 : f32 to vector<2x8xf32>
    %31 = vector.shape_cast %29 : vector<1x32xf32> to vector<1x1x32xf32>
    %32 = vector.broadcast %31 : vector<1x1x32xf32> to vector<2x8x32xf32>
    %33 = arith.mulf %28, %32 : vector<2x8x32xf32>
    %cst_23 = arith.constant dense<0.000000e+00> : vector<2x8xf32>
    %34 = vector.multi_reduction <add>, %33, %cst_23 [2] : vector<2x8x32xf32> to vector<2x8xf32>
    %35 = arith.addf %30, %34 : vector<2x8xf32>
    %cst_24 = arith.constant dense<0xFF800000> : vector<2xf32>
    %36 = vector.multi_reduction <maximumf>, %35, %cst_24 [1] : vector<2x8xf32> to vector<2xf32>
    %37 = vector.shape_cast %36 : vector<2xf32> to vector<2x1xf32>
    %38 = vector.broadcast %37 : vector<2x1xf32> to vector<2x8xf32>
    %39 = arith.subf %35, %38 : vector<2x8xf32>
    %40 = math.exp %39 : vector<2x8xf32>
    %cst_25 = arith.constant dense<0.000000e+00> : vector<2xf32>
    %41 = vector.multi_reduction <add>, %40, %cst_25 [1] : vector<2x8xf32> to vector<2xf32>
    %42 = vector.shape_cast %41 : vector<2xf32> to vector<2x1xf32>
    %43 = math.log %42 : vector<2x1xf32>
    %44 = vector.broadcast %43 : vector<2x1xf32> to vector<2x8xf32>
    %45 = arith.subf %39, %44 : vector<2x8xf32>
    %c0_26 = arith.constant 0 : index
    %c0_27 = arith.constant 0 : index
    %46 = vector.load %arg8[%c0_26, %c0_27] : memref<2x8xf32, #tpu.memory_space<vmem>>, vector<2x8xf32>
    tpu.vector_store %arg8[%c0_26, %c0_27], %45 {strides = array<i32>} : memref<2x8xf32, #tpu.memory_space<vmem>>, vector<2x8xf32>,
    return
  }
  func.func @transform_0(%arg0: i32) -> (i32, i32) {
    %c0_i32 = arith.constant 0 : i32
    %c0_i32_0 = arith.constant 0 : i32
    return %arg0, %c0_i32 : i32, i32
  }
  func.func @transform_1(%arg0: i32) -> (i32, i32, i32) {
    %c0_i32 = arith.constant 0 : i32
    %c0_i32_0 = arith.constant 0 : i32
    %c0_i32_1 = arith.constant 0 : i32
    return %arg0, %c0_i32, %c0_i32_0 : i32, i32, i32
  }
  func.func @transform_2(%arg0: i32) -> (i32, i32) {
    %c0_i32 = arith.constant 0 : i32
    %c0_i32_0 = arith.constant 0 : i32
    %c0_i32_1 = arith.constant 0 : i32
    return %c0_i32, %c0_i32_0 : i32, i32
  }
  func.func @transform_3(%arg0: i32) -> (i32, i32) {
    %c0_i32 = arith.constant 0 : i32
    %c0_i32_0 = arith.constant 0 : i32
    %c0_i32_1 = arith.constant 0 : i32
    return %c0_i32, %c0_i32_0 : i32, i32
  }
  func.func @transform_4(%arg0: i32) -> (i32, i32, i32) {
    %c0_i32 = arith.constant 0 : i32
    %c0_i32_0 = arith.constant 0 : i32
    %c0_i32_1 = arith.constant 0 : i32
    %c0_i32_2 = arith.constant 0 : i32
    return %c0_i32, %c0_i32_0, %c0_i32_1 : i32, i32, i32
  }
  func.func @transform_5(%arg0: i32) -> (i32, i32, i32) {
    %c0_i32 = arith.constant 0 : i32
    %c0_i32_0 = arith.constant 0 : i32
    %c0_i32_1 = arith.constant 0 : i32
    %c0_i32_2 = arith.constant 0 : i32
    return %c0_i32, %c0_i32_0, %c0_i32_1 : i32, i32, i32
  }
  func.func @transform_6(%arg0: i32) -> (i32, i32) {
    %c0_i32 = arith.constant 0 : i32
    %c0_i32_0 = arith.constant 0 : i32
    %c0_i32_1 = arith.constant 0 : i32
    return %c0_i32, %c0_i32_0 : i32, i32
  }
  func.func @transform_7(%arg0: i32) -> (i32, i32) {
    %c0_i32 = arith.constant 0 : i32
    %c0_i32_0 = arith.constant 0 : i32
    return %arg0, %c0_i32 : i32, i32
  }
}

</mosaic_0001>

<llo_original>
// kernel: tpu_custom_call.1
$region0: #{tpu_custom_call.1}
  #allocation0 [shape = 'u32[]', space=smem, size = 0x4, offset = 0x4, fixed_abs, tag = 'smem constant byte address 0x4 - core index']
  #allocation1 [shape = 'u32[144,128]{1,0:T(1,128)}', space=vmem, size = 0x12000, scoped, tag = 'internal scratch']
  %s0 = inlined_call_operand.hbm [shape: bf16[2,16], index: 0, kind: input, shape index: {}]
  %s1 = inlined_call_operand.hbm [shape: bf16[2,8,16], index: 1, kind: input, shape index: {}]
  %s2 = inlined_call_operand.hbm [shape: bf16[16,32], index: 2, kind: input, shape index: {}]
  %s3 = inlined_call_operand.hbm [shape: bf16[16,32], index: 3, kind: input, shape index: {}]
  %s4 = inlined_call_operand.hbm [shape: bf16[1,32,32], index: 4, kind: input, shape index: {}]
  %s5 = inlined_call_operand.vmem [shape: f32[2,1,32], index: 5, kind: input, shape index: {}]
  %s6 = inlined_call_operand.vmem [shape: f32[1,32], index: 6, kind: input, shape index: {}]
  %s7 = inlined_call_operand.hbm [shape: f32[2,8], index: 7, kind: output, shape index: {}]
  %s8 = sld [smem:[#allocation0]]
  $region58: #{tpu_custom_call.1} parent=0
    _
  %s10 = ssub.s32 1, %s8
  %s11 = scalar_select 0, %s10, %s8
  $region1: #{tpu_custom_call.1} parent=0
    #allocation2 [shape = 'u8[512]{0}', space=vmem, size = 0x400, scoped, tag = 'input window, operand 0, single buffered']
    #allocation3 [shape = 's32[1]{0}', space=sflag, size = 0x4, scoped, tag = 'scoped memory for tpu_custom_call.1']
    #allocation4 [shape = 's32[1]{0}', space=sflag, size = 0x4, scoped, tag = 'scoped memory for tpu_custom_call.1']
    #allocation5 [shape = 'u8[4096]{0}', space=vmem, size = 0x1000, scoped, tag = 'input window, operand 1, single buffered']
    #allocation6 [shape = 's32[1]{0}', space=sflag, size = 0x4, scoped, tag = 'scoped memory for tpu_custom_call.1']
    #allocation7 [shape = 'u8[4096]{0}', space=vmem, size = 0x1000, scoped, tag = 'input window, operand 2, single buffered']
    #allocation8 [shape = 'u8[4096]{0}', space=vmem, size = 0x1000, scoped, tag = 'input window, operand 3, single buffered']
    #allocation9 [shape = 's32[1]{0}', space=sflag, size = 0x4, scoped, tag = 'scoped memory for tpu_custom_call.1']
    #allocation10 [shape = 'u8[8192]{0}', space=vmem, size = 0x2000, scoped, tag = 'input window, operand 4, single buffered']
    #allocation11 [shape = 'u8[1024]{0}', space=vmem, size = 0x400, scoped, tag = 'output window, operand 0, single buffered']
    %12 = vsyncpa [#allocation3], 0
    %13 = vsyncpa [#allocation6], 0
    %14 = vsyncpa [#allocation9], 0
    %15 = vsyncpa [#allocation4], 0
    // Predicated region
    $region2: #{tpu_custom_call.1} parent=1 // pred_check
      _
    $region3: #{tpu_custom_call.1} parent=1 // pred_check_branch
      %17 = sbr.rel (0) target = $region5
    $region4: #{tpu_custom_call.1} parent=1 // pred_region
      %s19 = ssub.s32 16, 16
      %20 = vsyncadd [#allocation3], %s19
      %s22 = sshll.u32 [#allocation2], 4
      %s23 = int_to_ptr.vmem [resolvable:$true] %s22
      %25 = dma.hbm_to_vmem [thread:$0]  %s0, 16, %s23, [#allocation3]
    $region5: #{tpu_custom_call.1} parent=1 // pred_fallthru
      _
    // Predicated region
    $region6: #{tpu_custom_call.1} parent=1 // pred_check
      _
    $region7: #{tpu_custom_call.1} parent=1 // pred_check_branch
      %27 = sbr.rel (0) target = $region9
    $region8: #{tpu_custom_call.1} parent=1 // pred_region
      %s29 = ssub.s32 128, 128
      %30 = vsyncadd [#allocation6], %s29
      %s31 = sshll.u32 [#allocation5], 4
      %s32 = int_to_ptr.vmem [resolvable:$true] %s31
      %37 = dma.hbm_to_vmem [thread:$0]  %s1, 128, %s32, [#allocation6], 64, 64, 4
    $region9: #{tpu_custom_call.1} parent=1 // pred_fallthru
      _
    // Predicated region
    $region10: #{tpu_custom_call.1} parent=1 // pred_check
      _
    $region11: #{tpu_custom_call.1} parent=1 // pred_check_branch
      %39 = sbr.rel (0) target = $region13
    $region12: #{tpu_custom_call.1} parent=1 // pred_region
      %s41 = ssub.s32 128, 128
      %42 = vsyncadd [#allocation6], %s41
      %s43 = sshll.u32 [#allocation7], 4
      %s44 = int_to_ptr.vmem [resolvable:$true] %s43
      %49 = dma.hbm_to_vmem [thread:$0]  %s2, 128, %s44, [#allocation6], 64, 64, 4
    $region13: #{tpu_custom_call.1} parent=1 // pred_fallthru
      _
    // Predicated region
    $region14: #{tpu_custom_call.1} parent=1 // pred_check
      _
    $region15: #{tpu_custom_call.1} parent=1 // pred_check_branch
      %51 = sbr.rel (0) target = $region17
    $region16: #{tpu_custom_call.1} parent=1 // pred_region
      %s53 = ssub.s32 128, 128
      %54 = vsyncadd [#allocation9], %s53
      %s55 = sshll.u32 [#allocation8], 4
      %s56 = int_to_ptr.vmem [resolvable:$true] %s55
      %61 = dma.hbm_to_vmem [thread:$0]  %s3, 128, %s56, [#allocation9], 64, 64, 4
    $region17: #{tpu_custom_call.1} parent=1 // pred_fallthru
      _
    // Predicated region
    $region18: #{tpu_custom_call.1} parent=1 // pred_check
      _
    $region19: #{tpu_custom_call.1} parent=1 // pred_check_branch
      %63 = sbr.rel (0) target = $region21
    $region20: #{tpu_custom_call.1} parent=1 // pred_region
      %s65 = ssub.s32 256, 256
      %66 = vsyncadd [#allocation9], %s65
      %s67 = sshll.u32 [#allocation10], 4
      %s68 = int_to_ptr.vmem [resolvable:$true] %s67
      %73 = dma.hbm_to_vmem [thread:$0]  %s4, 256, %s68, [#allocation9], 64, 64, 4
    $region21: #{tpu_custom_call.1} parent=1 // pred_fallthru
      _
    // Predicated region
    $region22: #{tpu_custom_call.1} parent=1 // pred_check
      _
    $region23: #{tpu_custom_call.1} parent=1 // pred_check_branch
      %75 = sbr.rel (0) target = $region25
    $region24: #{tpu_custom_call.1} parent=1 // pred_region
      _
    $region25: #{tpu_custom_call.1} parent=1 // pred_fallthru
      _
    // Predicated region
    $region26: #{tpu_custom_call.1} parent=1 // pred_check
      _
    $region27: #{tpu_custom_call.1} parent=1 // pred_check_branch
      %77 = sbr.rel (0) target = $region29
    $region28: #{tpu_custom_call.1} parent=1 // pred_region
      _
    $region29: #{tpu_custom_call.1} parent=1 // pred_fallthru
      _
    // Predicated region
    $region30: #{tpu_custom_call.1} parent=1 // pred_check
      _
    $region31: #{tpu_custom_call.1} parent=1 // pred_check_branch
      %79 = sbr.rel (0) target = $region33
    $region32: #{tpu_custom_call.1} parent=1 // pred_region
      %80 = dma.done [#allocation3], 16
    $region33: #{tpu_custom_call.1} parent=1 // pred_fallthru
      _
    // Predicated region
    $region34: #{tpu_custom_call.1} parent=1 // pred_check
      _
    $region35: #{tpu_custom_call.1} parent=1 // pred_check_branch
      %82 = sbr.rel (0) target = $region37
    $region36: #{tpu_custom_call.1} parent=1 // pred_region
      %83 = dma.done [#allocation6], 128
    $region37: #{tpu_custom_call.1} parent=1 // pred_fallthru
      _
    // Predicated region
    $region38: #{tpu_custom_call.1} parent=1 // pred_check
      _
    $region39: #{tpu_custom_call.1} parent=1 // pred_check_branch
      %85 = sbr.rel (0) target = $region41
    $region40: #{tpu_custom_call.1} parent=1 // pred_region
      %86 = dma.done [#allocation6], 128
    $region41: #{tpu_custom_call.1} parent=1 // pred_fallthru
      _
    // Predicated region
    $region42: #{tpu_custom_call.1} parent=1 // pred_check
      _
    $region43: #{tpu_custom_call.1} parent=1 // pred_check_branch
      %88 = sbr.rel (0) target = $region45
    $region44: #{tpu_custom_call.1} parent=1 // pred_region
      %89 = dma.done [#allocation9], 128
    $region45: #{tpu_custom_call.1} parent=1 // pred_fallthru
      _
    // Predicated region
    $region46: #{tpu_custom_call.1} parent=1 // pred_check
      _
    $region47: #{tpu_custom_call.1} parent=1 // pred_check_branch
      %91 = sbr.rel (0) target = $region49
    $region48: #{tpu_custom_call.1} parent=1 // pred_region
      %92 = dma.done [#allocation9], 256
    $region49: #{tpu_custom_call.1} parent=1 // pred_fallthru
      _
    %v94 = vld [vmem:[%s5] sm:$0x1]
    %v95 = vld [vmem:[#allocation2] sm:$0x1]
    %v96 = vld [vmem:[#allocation7] sm:$0xf]
    %v97 = vld [vmem:[#allocation7 + $0x4] sm:$0xf]
    %v99 = vlaneseq
    %v100 = vshrl.u32 %v99, 7
    %v101 = vsub.s32 0, %v100
    %v102 = vrot.slane %v94, %v101
    %v106 = vunpack.c.l.b16 %v96
    %v107 = vunpack.c.l.b16 %v97
    %v108 = vpack.c.b16 %v107, %v106
    %vm110 = vcmask 130048
    %v112 = vsel %vm110, %v95, 0
    %114 = vmatprep.subr.bf16.mxu0 0
    %115 = vmatpush1.bf16.msra.mxu0 0
    %116 = vmatprep.subr.bf16.mxu0 0
    %117 = vmatpush1.bf16.msra.mxu0 0
    %118 = vmatprep.subr.bf16.mxu0 0
    %119 = vmatpush1.bf16.msra.mxu0 0
    %120 = vmatprep.subr.bf16.mxu0 0
    %121 = vmatpush1.bf16.msra.mxu0 0
    %122 = vmatprep.subr.bf16.mxu0 0
    %123 = vmatpush1.bf16.msra.mxu0 0
    %124 = vmatprep.subr.bf16.mxu0 0
    %125 = vmatpush1.bf16.msra.mxu0 0
    %126 = vmatprep.subr.bf16.mxu0 0
    %127 = vmatpush1.bf16.msra.mxu0 0
    %128 = vmatprep.subr.bf16.mxu0 0
    %129 = vmatpush1.bf16.msra.mxu0 %v108
    %130 = vmatprep.subr.bf16.mxu0 0
    %131 = vmatpush2.bf16.msra.mxu0 0
    %132 = vmatprep.subr.bf16.mxu0 0
    %133 = vmatpush2.bf16.msra.mxu0 0
    %134 = vmatprep.subr.bf16.mxu0 0
    %135 = vmatpush2.bf16.msra.mxu0 0
    %136 = vmatprep.subr.bf16.mxu0 0
    %137 = vmatpush2.bf16.msra.mxu0 0
    %138 = vmatprep.subr.bf16.mxu0 0
    %139 = vmatpush2.bf16.msra.mxu0 0
    %140 = vmatprep.subr.bf16.mxu0 0
    %141 = vmatpush2.bf16.msra.mxu0 0
    %142 = vmatprep.subr.bf16.mxu0 0
    %143 = vmatpush2.bf16.msra.mxu0 0
    %144 = vmatprep.subr.bf16.mxu0 0
    %145 = vmatpush2.bf16.msra.mxu0 0
    %146 = vmatprep.mubr.bf16.mxu0 0
    %147 = vmatmul.mubr.bf16.gmra.mxu0 %v112
    %v148 = vpop.f32.mrf.mxu0
    %v149 = vadd.f32 %v102, %v148
    %v150 = vpop.f32.mrf.mxu0
    %v151 = vpop.f32.mrf.mxu0
    %v152 = vpop.f32.mrf.mxu0
    %153 = vdwg.mxu0
    %v154 = vld [vmem:[#allocation5] sm:$0xf]
    %v155 = vld [vmem:[#allocation5 + $0x4] sm:$0xf]
    %v156 = vld [vmem:[#allocation8] sm:$0xf]
    %v157 = vld [vmem:[#allocation8 + $0x4] sm:$0xf]
    %v160 = vunpack.c.l.b16 %v154
    %v161 = vunpack.c.l.b16 %v155
    %v162 = vpack.c.b16 %v161, %v160
    %v165 = vunpack.c.l.b16 %v156
    %v166 = vunpack.c.l.b16 %v157
    %v167 = vpack.c.b16 %v166, %v165
    %v170 = vsel %vm110, %v162, 0
    %172 = vmatprep.subr.bf16.mxu0 0
    %173 = vmatpush1.bf16.msra.mxu0 0
    %174 = vmatprep.subr.bf16.mxu0 0
    %175 = vmatpush1.bf16.msra.mxu0 0
    %176 = vmatprep.subr.bf16.mxu0 0
    %177 = vmatpush1.bf16.msra.mxu0 0
    %178 = vmatprep.subr.bf16.mxu0 0
    %179 = vmatpush1.bf16.msra.mxu0 0
    %180 = vmatprep.subr.bf16.mxu0 0
    %181 = vmatpush1.bf16.msra.mxu0 0
    %182 = vmatprep.subr.bf16.mxu0 0
    %183 = vmatpush1.bf16.msra.mxu0 0
    %184 = vmatprep.subr.bf16.mxu0 0
    %185 = vmatpush1.bf16.msra.mxu0 0
    %186 = vmatprep.subr.bf16.mxu0 0
    %187 = vmatpush1.bf16.msra.mxu0 %v167
    %188 = vmatprep.subr.bf16.mxu0 0
    %189 = vmatpush2.bf16.msra.mxu0 0
    %190 = vmatprep.subr.bf16.mxu0 0
    %191 = vmatpush2.bf16.msra.mxu0 0
    %192 = vmatprep.subr.bf16.mxu0 0
    %193 = vmatpush2.bf16.msra.mxu0 0
    %194 = vmatprep.subr.bf16.mxu0 0
    %195 = vmatpush2.bf16.msra.mxu0 0
    %196 = vmatprep.subr.bf16.mxu0 0
    %197 = vmatpush2.bf16.msra.mxu0 0
    %198 = vmatprep.subr.bf16.mxu0 0
    %199 = vmatpush2.bf16.msra.mxu0 0
    %200 = vmatprep.subr.bf16.mxu0 0
    %201 = vmatpush2.bf16.msra.mxu0 0
    %202 = vmatprep.subr.bf16.mxu0 0
    %203 = vmatpush2.bf16.msra.mxu0 0
    %204 = vmatprep.mubr.bf16.mxu0 0
    %205 = vmatmul.mubr.bf16.gmra.mxu0 %v170
    %v206 = vpop.f32.mrf.mxu0
    %v207 = vadd.f32 0.0, %v206
    %v208 = vpop.f32.mrf.mxu0
    %v209 = vpop.f32.mrf.mxu0
    %v210 = vadd.f32 0.0, %v209
    %v211 = vpop.f32.mrf.mxu0
    %212 = vdwg.mxu0
    %v215 = vunpack.c.l.s4 1966171168
    %v216 = vunpack.c.0.s8 %v215
    %v217 = vlaneseq
    %v218 = vshrl.u32 %v217, 7
    %v219 = vsub.s32 %v216, %v218
    %v220 = vrot.slane %v149, %v219
    %v221 = vcombine.high %v220, %v220
    %v223 = vunpack.c.l.s4 1966171168
    %v224 = vunpack.c.0.s8 %v223
    %v225 = vlaneseq
    %v226 = vshrl.u32 %v225, 7
    %v227 = vsub.s32 %v224, %v226
    %v228 = vrot.slane %v220, %v227
    %v230 = vunpack.c.l.s4 1966171168
    %v231 = vunpack.c.0.s8 %v230
    %v232 = vlaneseq
    %v233 = vshrl.u32 %v232, 7
    %v234 = vsub.s32 %v231, %v233
    %v235 = vrot.slane %v221, %v234
    %v236 = vlaneseq
    %v237 = vshrl.u32 %v236, 7
    %v238 = vsub.s32 0, %v237
    %v239 = vrot.slane %v228, %v238
    %v240 = vlaneseq
    %v241 = vshrl.u32 %v240, 7
    %v242 = vsub.s32 0, %v241
    %v243 = vrot.slane %v235, %v242
    %v246 = vadd.f32 %v207, %v239
    %v247 = vadd.f32 %v210, %v243
    %v248 = vmax.f32 %v246, 0.0
    %v249 = vmax.f32 %v247, 0.0
    %v250 = vld [vmem:[#allocation10] sm:$0xf]
    %v251 = vld [vmem:[#allocation10 + $0x4] sm:$0xf]
    %v252 = vld [vmem:[#allocation10 + $0x8] sm:$0xf]
    %v253 = vld [vmem:[#allocation10 + $0xc] sm:$0xf]
    %s254 = scalar_lea.vmem %s5, 1
    %v255 = vld [vmem:[%s254] sm:$0x1]
    %v256 = vpack.c.bf16 %v249, %v248
    %v258 = vlaneseq
    %v259 = vshrl.u32 %v258, 7
    %v260 = vsub.s32 0, %v259
    %v261 = vrot.slane %v255, %v260
    %v267 = vunpack.c.l.b16 %v250
    %v268 = vunpack.c.l.b16 %v251
    %v269 = vunpack.c.l.b16 %v252
    %v270 = vunpack.c.l.b16 %v253
    %v271 = vpack.c.b16 %v268, %v267
    %v272 = vpack.c.b16 %v270, %v269
    %vm275 = vcmask 261120
    %v277 = vsel %vm275, %v256, 0
    %279 = vmatprep.subr.bf16.mxu0 0
    %280 = vmatpush1.bf16.msra.mxu0 0
    %281 = vmatprep.subr.bf16.mxu0 0
    %282 = vmatpush1.bf16.msra.mxu0 0
    %283 = vmatprep.subr.bf16.mxu0 0
    %284 = vmatpush1.bf16.msra.mxu0 0
    %285 = vmatprep.subr.bf16.mxu0 0
    %286 = vmatpush1.bf16.msra.mxu0 0
    %287 = vmatprep.subr.bf16.mxu0 0
    %288 = vmatpush1.bf16.msra.mxu0 0
    %289 = vmatprep.subr.bf16.mxu0 0
    %290 = vmatpush1.bf16.msra.mxu0 0
    %291 = vmatprep.subr.bf16.mxu0 0
    %292 = vmatpush1.bf16.msra.mxu0 %v272
    %293 = vmatprep.subr.bf16.mxu0 0
    %294 = vmatpush1.bf16.msra.mxu0 %v271
    %295 = vmatprep.subr.bf16.mxu0 0
    %296 = vmatpush2.bf16.msra.mxu0 0
    %297 = vmatprep.subr.bf16.mxu0 0
    %298 = vmatpush2.bf16.msra.mxu0 0
    %299 = vmatprep.subr.bf16.mxu0 0
    %300 = vmatpush2.bf16.msra.mxu0 0
    %301 = vmatprep.subr.bf16.mxu0 0
    %302 = vmatpush2.bf16.msra.mxu0 0
    %303 = vmatprep.subr.bf16.mxu0 0
    %304 = vmatpush2.bf16.msra.mxu0 0
    %305 = vmatprep.subr.bf16.mxu0 0
    %306 = vmatpush2.bf16.msra.mxu0 0
    %307 = vmatprep.subr.bf16.mxu0 0
    %308 = vmatpush2.bf16.msra.mxu0 0
    %309 = vmatprep.subr.bf16.mxu0 0
    %310 = vmatpush2.bf16.msra.mxu0 0
    %311 = vmatprep.mubr.bf16.mxu0 0
    %312 = vmatmul.mubr.bf16.gmra.mxu0 %v277
    %v313 = vpop.f32.mrf.mxu0
    %v314 = vadd.f32 %v261, %v313
    %v315 = vpop.f32.mrf.mxu0
    %v316 = vpop.f32.mrf.mxu0
    %v317 = vadd.f32 %v261, %v316
    %v318 = vpop.f32.mrf.mxu0
    %319 = vdwg.mxu0
    %v320 = vmax.f32 %v314, 0.0
    %v321 = vmax.f32 %v317, 0.0
    %v322 = vld [vmem:[%s6] sm:$0x1]
    %v324 = vlaneseq
    %v325 = vshrl.u32 %v324, 7
    %v326 = vsub.s32 0, %v325
    %v327 = vrot.slane %v322, %v326
    %v329 = vmul.f32 %v320, %v327
    %v330 = vmul.f32 %v321, %v327
    %v331 = vsel %vm275, %v329, 0.0
    %332 = vadd.xlane.f32.xlu0 %v331
    %v333 = vpop.xlane.xlu0 %332
    %v334 = vsel %vm275, %v330, 0.0
    %335 = vadd.xlane.f32.xlu0 %v334
    %v336 = vpop.xlane.xlu0 %335
    %v337 = vadd.f32 %v333, 0.0
    %v338 = vadd.f32 %v336, 0.0
    %v341 = vlaneseq
    %v342 = vand.u32 %v341, 127
    %v343 = vlaneseq
    %v344 = vshrl.u32 %v343, 7
    %v345 = vsub.s32 %v342, %v344
    %v346 = vrot.slane %v337, %v345
    %v347 = vlaneseq
    %v348 = vshrl.u32 %v347, 7
    %v349 = vsub.s32 %v342, %v348
    %v350 = vrot.slane %v338, %v349
    %vm351 = vcmask 1041409
    %v352 = vsel %vm351, %v350, %v346
    %vm354 = vcmask 58368
    %v355 = vsel %vm354, %v352, -inf
    %356 = vmax.xlane.f32.xlu0 %v355
    %v357 = vpop.xlane.xlu0 %356
    %v359 = vlaneseq
    %v360 = vshrl.u32 %v359, 7
    %v361 = vsub.s32 0, %v360
    %v362 = vrot.slane %v357, %v361
    %v363 = vlaneseq
    %v364 = vshrl.u32 %v363, 7
    %v365 = vsub.s32 1, %v364
    %v366 = vrot.slane %v357, %v365
    %v369 = vsub.f32 %v337, %v362
    %v370 = vsub.f32 %v338, %v366
    %v371 = vmul.f32 %v369, 1.442695
    %v372 = vpow.pop %v371
    %v373 = vmul.f32 %v370, 1.442695
    %v374 = vpow.pop %v373
    %377 = vset.pattern.permute.xlu0 0
    %378 = vperm.xlu0 %377, %v372
    %v379 = vpop.permute.xlu0 %378
    %380 = vset.pattern.permute.xlu0 0
    %381 = vperm.xlu0 %380, %v374
    %v382 = vpop.permute.xlu0 %381
    %v383 = vlaneseq
    %v384 = vshrl.u32 %v383, 7
    %v385 = vsub.s32 %v342, %v384
    %v386 = vrot.slane %v379, %v385
    %v387 = vlaneseq
    %v388 = vshrl.u32 %v387, 7
    %v389 = vsub.s32 %v342, %v388
    %v390 = vrot.slane %v382, %v389
    %v391 = vsel %vm351, %v390, %v386
    %v393 = vsel %vm354, %v391, 0.0
    %394 = vadd.xlane.f32.xlu0 %v393
    %v395 = vpop.xlane.xlu0 %394
    %v396 = vlog2.pop %v395
    %v397 = vmul.f32 %v396, 0.6931472
    %v399 = vlaneseq
    %v400 = vshrl.u32 %v399, 7
    %v401 = vsub.s32 0, %v400
    %v402 = vrot.slane %v397, %v401
    %v403 = vlaneseq
    %v404 = vshrl.u32 %v403, 7
    %v405 = vsub.s32 1, %v404
    %v406 = vrot.slane %v397, %v405
    %v409 = vsub.f32 %v369, %v402
    %v410 = vsub.f32 %v370, %v406
    %413 = vset.pattern.permute.xlu0 0
    %414 = vperm.xlu0 %413, %v409
    %v415 = vpop.permute.xlu0 %414
    %416 = vset.pattern.permute.xlu0 0
    %417 = vperm.xlu0 %416, %v410
    %v418 = vpop.permute.xlu0 %417
    %v419 = vlaneseq
    %v420 = vshrl.u32 %v419, 7
    %v421 = vsub.s32 %v342, %v420
    %v422 = vrot.slane %v415, %v421
    %v423 = vlaneseq
    %v424 = vshrl.u32 %v423, 7
    %v425 = vsub.s32 %v342, %v424
    %v426 = vrot.slane %v418, %v425
    %v427 = vsel %vm351, %v426, %v422
    %429 = vst.msk [vmem:[#allocation11] sm:$0x3] %vm354, %v427
    // Predicated region
    $region50: #{tpu_custom_call.1} parent=1 // pred_check
      _
    $region51: #{tpu_custom_call.1} parent=1 // pred_check_branch
      %431 = sbr.rel (0) target = $region53
    $region52: #{tpu_custom_call.1} parent=1 // pred_region
      %s433 = ssub.s32 32, 32
      %434 = vsyncadd [#allocation4], %s433
      %s436 = sshll.u32 [#allocation11], 4
      %s437 = int_to_ptr.vmem [resolvable:$true] %s436
      %439 = dma.vmem_to_hbm [thread:$0]  %s437, 32, %s7, [#allocation4]
    $region53: #{tpu_custom_call.1} parent=1 // pred_fallthru
      _
    // Predicated region
    $region54: #{tpu_custom_call.1} parent=1 // pred_check
      _
    $region55: #{tpu_custom_call.1} parent=1 // pred_check_branch
      %441 = sbr.rel (0) target = $region57
    $region56: #{tpu_custom_call.1} parent=1 // pred_region
      %442 = dma.done [#allocation4], 32
    $region57: #{tpu_custom_call.1} parent=1 // pred_fallthru
      _
    %443 = vsyncpa [#allocation3], 1
    %444 = vsyncpa [#allocation6], 1
    %445 = vsyncpa [#allocation9], 1
    %446 = vsyncpa [#allocation4], 1

</llo_original>
